<compile_context>
chip_gen: v5e
topology: v5e:2x2
jax: 0.10.0
libtpu: 0.0.40
codegen_flags: <defaults>
</compile_context>

<pallas_src>
import jax
import jax.numpy as jnp
from jax.experimental import pallas as pl
from jax.experimental.pallas import tpu as pltpu


def opponent_embedding_kernel(x_ref, w_ref, out_ref):
    # x_ref: (Btile, N, D) player embeddings (storage dtype, e.g. f32 or bf16)
    # w_ref: (1, D) attention weight (lane-major, nn.Linear weight layout)
    # out_ref: (Btile, D) pooled opponent embeddings
    x = x_ref[...]
    w = w_ref[...]

    # Attention scores via VPU multiply + lane reduce (no MXU for a D->1
    # contraction).  Multiply in the storage dtype (bf16-friendly on v6e/v7x);
    # accumulate the reduction in f32.
    prod = x * w                                           # (Btile, N, D)
    if prod.dtype != jnp.float32:
        prod = prod.astype(jnp.float32)
    scores = jnp.sum(prod, axis=2, keepdims=True)          # (Btile, N, 1) f32

    # Numerically stable softmax over the player axis (dim=0 per instance).
    m = jnp.max(scores, axis=1, keepdims=True)             # (Btile, 1, 1)
    e = jnp.exp(scores - m)                                # (Btile, N, 1) f32
    denom = jnp.sum(e, axis=1, keepdims=True)              # (Btile, 1, 1)

    # Weighted sum over players; normalization folded AFTER the reduction
    # (weights never materialized) with an exact divide for parity with the
    # PyTorch module.  `e * x` promotes bf16 x to f32 for the accumulate.
    pooled = jnp.sum(e * x, axis=1)                        # (Btile, D) f32
    out_ref[...] = (pooled / denom[:, 0, :]).astype(out_ref.dtype)


def opponent_embedding_batched(player_embeddings, attn_weight, *, btile=512):
    """player_embeddings: (B, N, D), attn_weight: (1, D)  ->  (B, D).

    B independent applications of the module (shared attention weight).

    Tile sizing: btile=512 moves ~2 MiB of x per grid step (measured mem-bound
    tilings hit >=85% of HBM roofline at >=512-row blocks) while the
    double-buffered blocks (~4.5 MiB) stay far under the default scoped VMEM on
    v5e/v6e/v7x (16/32/32 MiB) and v7x's 64 MiB physical.  Past btile~=2048,
    raise pltpu.CompilerParams(vmem_limit_bytes=...); never add deeper
    buffering (pl.Buffered(3)) to this DMA-bandwidth-bound loop.
    """
    B, N, D = player_embeddings.shape
    assert attn_weight.shape == (1, D)
    out_dtype = player_embeddings.dtype

    # Clamp the tile to the batch and round to a sublane multiple so the
    # (btile, D) output block satisfies the (8, 128) tiling constraint.
    btile = max(8, min(btile, B))
    btile = ((btile + 7) // 8) * 8
    b_pad = ((B + btile - 1) // btile) * btile
    if b_pad != B:
        # Zero rows are safe: softmax of all-zero scores is uniform and the
        # weighted sum of zero embeddings is zero; padded rows are sliced off.
        player_embeddings = jnp.pad(
            player_embeddings, ((0, b_pad - B), (0, 0), (0, 0)))
    num_blocks = b_pad // btile

    # v7x: genuinely shard the batch axis across the two TensorCores
    # ("parallel" vs "arbitrary" barely changes codegen; CORE_PARALLEL does).
    try:
        kind = jax.devices()[0].device_kind.lower()
    except Exception:
        kind = ""
    if ("v7" in kind or "tpu7" in kind) and num_blocks > 1 and num_blocks % 2 == 0:
        dim_sem = (pltpu.CORE_PARALLEL,)
    else:
        dim_sem = ("parallel",)

    in_itemsize = jnp.dtype(player_embeddings.dtype).itemsize
    out_itemsize = jnp.dtype(out_dtype).itemsize
    cost = pl.CostEstimate(
        flops=4 * b_pad * N * D,            # two multiply+reduce passes over x
        transcendentals=b_pad * N,          # one exp per (batch, player)
        bytes_accessed=(b_pad * N * D + D) * in_itemsize
        + b_pad * D * out_itemsize,
    )

    out = pl.pallas_call(
        opponent_embedding_kernel,
        out_shape=jax.ShapeDtypeStruct((b_pad, D), out_dtype),
        grid=(num_blocks,),
        in_specs=[
            pl.BlockSpec((btile, N, D), lambda b: (b, 0, 0)),
            pl.BlockSpec((1, D), lambda b: (0, 0)),
        ],
        out_specs=pl.BlockSpec((btile, D), lambda b: (b, 0)),
        compiler_params=pltpu.CompilerParams(dimension_semantics=dim_sem),
        cost_estimate=cost,
    )(player_embeddings, attn_weight)

    return out[:B] if b_pad != B else out


def opponent_embedding(player_embeddings, attn_weight):
    """Single-instance API matching the PyTorch module: (N, D), (1, D) -> (D,).

    Per perf review: a (1, N, D) problem is ~4 KiB of data; the pallas_call
    launch + DMA setup dwarfs the work and fused XLA beats the kernel, so this
    path stays in pure JAX.  Use opponent_embedding_batched for real batches.
    """
    scores = jnp.sum(player_embeddings * attn_weight[0], axis=-1, keepdims=True)
    weights = jax.nn.softmax(scores, axis=0)
    return jnp.sum(weights * player_embeddings, axis=0)


def reference_batched(player_embeddings, attn_weight):
    # Same math path as the module: scores -> softmax over players -> weighted sum.
    scores = jnp.sum(player_embeddings * attn_weight[0], axis=-1, keepdims=True)
    weights = jax.nn.softmax(scores, axis=1)
    return jnp.sum(weights * player_embeddings, axis=1)


if __name__ == "__main__":
    N, D = 8, 128
    key = jax.random.PRNGKey(0)
    k_x, k_w, k_x2 = jax.random.split(key, 3)

    # Deterministic parameter init (synthetic; mimics nn.Linear uniform scale).
    bound = 1.0 / jnp.sqrt(jnp.float32(D))
    attn_weight = jax.random.uniform(
        k_w, (1, D), dtype=jnp.float32, minval=-bound, maxval=bound
    )

    # 1) Divisible batch: runs as a single large block (grid = (1,)).
    B = 16
    x = jax.random.normal(k_x, (B, N, D), dtype=jnp.float32)
    out = jax.block_until_ready(opponent_embedding_batched(x, attn_weight))
    ref = reference_batched(x, attn_weight)
    assert out.shape == (B, D)
    assert jnp.allclose(out, ref, atol=1e-4, rtol=1e-4), (
        f"batched mismatch: max abs err {jnp.max(jnp.abs(out - ref))}"
    )

    # 2) Multi-block path (grid = (2,)) with an explicit small tile.
    out2 = jax.block_until_ready(opponent_embedding_batched(x, attn_weight, btile=8))
    assert jnp.allclose(out2, ref, atol=1e-4, rtol=1e-4), (
        f"multi-block mismatch: max abs err {jnp.max(jnp.abs(out2 - ref))}"
    )

    # 3) Non-divisible batch: padded to the tile and sliced back.
    B3 = 13
    x3 = jax.random.normal(k_x2, (B3, N, D), dtype=jnp.float32)
    out3 = jax.block_until_ready(opponent_embedding_batched(x3, attn_weight))
    ref3 = reference_batched(x3, attn_weight)
    assert out3.shape == (B3, D)
    assert jnp.allclose(out3, ref3, atol=1e-4, rtol=1e-4), (
        f"padded-batch mismatch: max abs err {jnp.max(jnp.abs(out3 - ref3))}"
    )

    # 4) Single-instance API (pure JAX fast path, exactly the PyTorch signature).
    single = jax.block_until_ready(opponent_embedding(x[0], attn_weight))
    assert single.shape == (D,)
    assert jnp.allclose(single, ref[0], atol=1e-4, rtol=1e-4), (
        f"single mismatch: max abs err {jnp.max(jnp.abs(single - ref[0]))}"
    )

    print("KERNEL_OK")
</pallas_src>

<mosaic_0001>
module attributes {stable_mosaic.version = 11 : i64} {
  func.func @opponent_embedding_kernel(%arg0: i32, %arg1: memref<16x8x128xf32, #tpu.memory_space<vmem>>, %arg2: memref<1x128xf32, #tpu.memory_space<vmem>>, %arg3: memref<16x128xf32, #tpu.memory_space<vmem>>) attributes {dimension_semantics = [#tpu.dimension_semantics<parallel>], iteration_bounds = array<i64: 1>, scalar_prefetch = 0 : i64, scratch_operands = 0 : i64, tpu.core_type = #tpu.core_type<tc>, window_params = [{transform_indices = @transform_0, window_bounds = array<i64: 16, 8, 128>}, {pipeline_mode = #tpu.pipeline_mode<synchronous>, transform_indices = @transform_1, window_bounds = array<i64: 1, 128>}, {transform_indices = @transform_2, window_bounds = array<i64: 16, 128>}]} {
    %c0 = arith.constant 0 : index
    %c0_0 = arith.constant 0 : index
    %c0_1 = arith.constant 0 : index
    %0 = vector.load %arg1[%c0, %c0_0, %c0_1] : memref<16x8x128xf32, #tpu.memory_space<vmem>>, vector<16x8x128xf32>
    %c0_2 = arith.constant 0 : index
    %c0_3 = arith.constant 0 : index
    %1 = vector.load %arg2[%c0_2, %c0_3] : memref<1x128xf32, #tpu.memory_space<vmem>>, vector<1x128xf32>
    %2 = vector.shape_cast %1 : vector<1x128xf32> to vector<1x1x128xf32>
    %3 = vector.broadcast %2 : vector<1x1x128xf32> to vector<16x8x128xf32>
    %4 = arith.mulf %0, %3 : vector<16x8x128xf32>
    %cst = arith.constant dense<0.000000e+00> : vector<16x8xf32>
    %5 = vector.multi_reduction <add>, %4, %cst [2] : vector<16x8x128xf32> to vector<16x8xf32>
    %6 = vector.shape_cast %5 : vector<16x8xf32> to vector<16x8x1xf32>
    %cst_4 = arith.constant dense<0xFF800000> : vector<16x1xf32>
    %7 = vector.multi_reduction <maximumf>, %6, %cst_4 [1] : vector<16x8x1xf32> to vector<16x1xf32>
    %8 = vector.shape_cast %7 : vector<16x1xf32> to vector<16x1x1xf32>
    %9 = vector.broadcast %8 : vector<16x1x1xf32> to vector<16x8x1xf32>
    %10 = arith.subf %6, %9 : vector<16x8x1xf32>
    %11 = math.exp %10 : vector<16x8x1xf32>
    %cst_5 = arith.constant dense<0.000000e+00> : vector<16x1xf32>
    %12 = vector.multi_reduction <add>, %11, %cst_5 [1] : vector<16x8x1xf32> to vector<16x1xf32>
    %13 = vector.shape_cast %12 : vector<16x1xf32> to vector<16x1x1xf32>
    %14 = vector.broadcast %11 : vector<16x8x1xf32> to vector<16x8x128xf32>
    %15 = arith.mulf %14, %0 : vector<16x8x128xf32>
    %cst_6 = arith.constant dense<0.000000e+00> : vector<16x128xf32>
    %16 = vector.multi_reduction <add>, %15, %cst_6 [1] : vector<16x8x128xf32> to vector<16x128xf32>
    %17 = vector.shape_cast %13 : vector<16x1x1xf32> to vector<16x1xf32>
    %18 = vector.broadcast %17 : vector<16x1xf32> to vector<16x128xf32>
    %19 = arith.divf %16, %18 : vector<16x128xf32>
    %c0_7 = arith.constant 0 : index
    %c0_8 = arith.constant 0 : index
    %20 = vector.load %arg3[%c0_7, %c0_8] : memref<16x128xf32, #tpu.memory_space<vmem>>, vector<16x128xf32>
    tpu.vector_store %arg3[%c0_7, %c0_8], %19 {strides = array<i32>} : memref<16x128xf32, #tpu.memory_space<vmem>>, vector<16x128xf32>,
    return
  }
  func.func @transform_0(%arg0: i32) -> (i32, i32, i32) {
    %c0_i32 = arith.constant 0 : i32
    %c0_i32_0 = arith.constant 0 : i32
    %c0_i32_1 = arith.constant 0 : i32
    return %arg0, %c0_i32, %c0_i32_0 : i32, i32, i32
  }
  func.func @transform_1(%arg0: i32) -> (i32, i32) {
    %c0_i32 = arith.constant 0 : i32
    %c0_i32_0 = arith.constant 0 : i32
    %c0_i32_1 = arith.constant 0 : i32
    return %c0_i32, %c0_i32_0 : i32, i32
  }
  func.func @transform_2(%arg0: i32) -> (i32, i32) {
    %c0_i32 = arith.constant 0 : i32
    %c0_i32_0 = arith.constant 0 : i32
    return %arg0, %c0_i32 : i32, i32
  }
}

</mosaic_0001>

<llo_original>
// kernel: tpu_custom_call.1
$region0: #{tpu_custom_call.1}
  #allocation0 [shape = 'u32[]', space=smem, size = 0x4, offset = 0x4, fixed_abs, tag = 'smem constant byte address 0x4 - core index']
  #allocation1 [shape = 'u32[72,128]{1,0:T(1,128)}', space=vmem, size = 0x9000, scoped, tag = 'internal scratch']
  %s0 = inlined_call_operand.hbm [shape: f32[16,8,128], index: 0, kind: input, shape index: {}]
  %s1 = inlined_call_operand.hbm [shape: f32[1,128], index: 1, kind: input, shape index: {}]
  %s2 = inlined_call_operand.hbm [shape: f32[16,128], index: 2, kind: output, shape index: {}]
  %s3 = sld [smem:[#allocation0]]
  $region26: #{tpu_custom_call.1} parent=0
    _
  %s5 = ssub.s32 1, %s3
  %s6 = scalar_select 0, %s5, %s3
  $region1: #{tpu_custom_call.1} parent=0
    #allocation2 [shape = 'u8[65536]{0}', space=vmem, size = 0x10000, scoped, tag = 'input window, operand 0, single buffered']
    #allocation3 [shape = 's32[1]{0}', space=sflag, size = 0x4, scoped, tag = 'scoped memory for tpu_custom_call.1']
    #allocation4 [shape = 's32[1]{0}', space=sflag, size = 0x4, scoped, tag = 'scoped memory for tpu_custom_call.1']
    #allocation5 [shape = 'u8[512]{0}', space=vmem, size = 0x400, scoped, tag = 'input window, operand 1, single buffered']
    #allocation6 [shape = 's32[1]{0}', space=sflag, size = 0x4, scoped, tag = 'scoped memory for tpu_custom_call.1']
    #allocation7 [shape = 'u8[8192]{0}', space=vmem, size = 0x2000, scoped, tag = 'output window, operand 0, single buffered']
    %7 = vsyncpa [#allocation3], 0
    %8 = vsyncpa [#allocation6], 0
    %9 = vsyncpa [#allocation4], 0
    // Predicated region
    $region2: #{tpu_custom_call.1} parent=1 // pred_check
      _
    $region3: #{tpu_custom_call.1} parent=1 // pred_check_branch
      %11 = sbr.rel (0) target = $region5
    $region4: #{tpu_custom_call.1} parent=1 // pred_region
      %13 = vsyncadd [#allocation3], 0
      %s14 = sshll.u32 %s0, 4
      %s15 = int_to_ptr.hbm [resolvable:$true] %s14
      %s16 = sshll.u32 [#allocation2], 4
      %s17 = int_to_ptr.vmem [resolvable:$true] %s16
      %22 = dma.hbm_to_vmem [thread:$0]  %s15, 2048, %s17, [#allocation3], 128, 128, 8
    $region5: #{tpu_custom_call.1} parent=1 // pred_fallthru
      _
    // Predicated region
    $region6: #{tpu_custom_call.1} parent=1 // pred_check
      _
    $region7: #{tpu_custom_call.1} parent=1 // pred_check_branch
      %24 = sbr.rel (0) target = $region9
    $region8: #{tpu_custom_call.1} parent=1 // pred_region
      %26 = vsyncadd [#allocation6], 0
      %s28 = sshll.u32 %s1, 4
      %s29 = int_to_ptr.hbm [resolvable:$true] %s28
      %s30 = sshll.u32 [#allocation5], 4
      %s31 = int_to_ptr.vmem [resolvable:$true] %s30
      %33 = dma.hbm_to_vmem [thread:$0]  %s29, 16, %s31, [#allocation6]
    $region9: #{tpu_custom_call.1} parent=1 // pred_fallthru
      _
    // Predicated region
    $region10: #{tpu_custom_call.1} parent=1 // pred_check
      _
    $region11: #{tpu_custom_call.1} parent=1 // pred_check_branch
      %35 = sbr.rel (0) target = $region13
    $region12: #{tpu_custom_call.1} parent=1 // pred_region
      %37 = dma.done [#allocation3], 2048
    $region13: #{tpu_custom_call.1} parent=1 // pred_fallthru
      _
    // Predicated region
    $region14: #{tpu_custom_call.1} parent=1 // pred_check
      _
    $region15: #{tpu_custom_call.1} parent=1 // pred_check_branch
      %39 = sbr.rel (0) target = $region17
    $region16: #{tpu_custom_call.1} parent=1 // pred_region
      %41 = dma.done [#allocation6], 16
    $region17: #{tpu_custom_call.1} parent=1 // pred_fallthru
      _
    %v42 = vld [vmem:[#allocation2] sm:$0xff]
    %v43 = vld [vmem:[#allocation2 + $0x8] sm:$0xff]
    %v44 = vld [vmem:[#allocation2 + $0x10] sm:$0xff]
    %v45 = vld [vmem:[#allocation2 + $0x18] sm:$0xff]
    %v46 = vld [vmem:[#allocation2 + $0x20] sm:$0xff]
    %v47 = vld [vmem:[#allocation2 + $0x28] sm:$0xff]
    %v48 = vld [vmem:[#allocation2 + $0x30] sm:$0xff]
    %v49 = vld [vmem:[#allocation2 + $0x38] sm:$0xff]
    %v50 = vld [vmem:[#allocation2 + $0x40] sm:$0xff]
    %v51 = vld [vmem:[#allocation2 + $0x48] sm:$0xff]
    %v52 = vld [vmem:[#allocation2 + $0x50] sm:$0xff]
    %v53 = vld [vmem:[#allocation2 + $0x58] sm:$0xff]
    %v54 = vld [vmem:[#allocation2 + $0x60] sm:$0xff]
    %v55 = vld [vmem:[#allocation2 + $0x68] sm:$0xff]
    %v56 = vld [vmem:[#allocation2 + $0x70] sm:$0xff]
    %v57 = vld [vmem:[#allocation2 + $0x78] sm:$0xff]
    %v58 = vld [vmem:[#allocation5] sm:$0x1]
    %v60 = vperm.slane %v58, 0
    %v62 = vmul.f32 %v42, %v60
    %v63 = vmul.f32 %v43, %v60
    %v64 = vmul.f32 %v44, %v60
    %v65 = vmul.f32 %v45, %v60
    %v66 = vmul.f32 %v46, %v60
    %v67 = vmul.f32 %v47, %v60
    %v68 = vmul.f32 %v48, %v60
    %v69 = vmul.f32 %v49, %v60
    %v70 = vmul.f32 %v50, %v60
    %v71 = vmul.f32 %v51, %v60
    %v72 = vmul.f32 %v52, %v60
    %v73 = vmul.f32 %v53, %v60
    %v74 = vmul.f32 %v54, %v60
    %v75 = vmul.f32 %v55, %v60
    %v76 = vmul.f32 %v56, %v60
    %v77 = vmul.f32 %v57, %v60
    %78 = vadd.xlane.f32.xlu0 %v62
    %v79 = vpop.xlane.xlu0 %78
    %80 = vadd.xlane.f32.xlu0 %v63
    %v81 = vpop.xlane.xlu0 %80
    %82 = vadd.xlane.f32.xlu0 %v64
    %v83 = vpop.xlane.xlu0 %82
    %84 = vadd.xlane.f32.xlu0 %v65
    %v85 = vpop.xlane.xlu0 %84
    %86 = vadd.xlane.f32.xlu0 %v66
    %v87 = vpop.xlane.xlu0 %86
    %88 = vadd.xlane.f32.xlu0 %v67
    %v89 = vpop.xlane.xlu0 %88
    %90 = vadd.xlane.f32.xlu0 %v68
    %v91 = vpop.xlane.xlu0 %90
    %92 = vadd.xlane.f32.xlu0 %v69
    %v93 = vpop.xlane.xlu0 %92
    %94 = vadd.xlane.f32.xlu0 %v70
    %v95 = vpop.xlane.xlu0 %94
    %96 = vadd.xlane.f32.xlu0 %v71
    %v97 = vpop.xlane.xlu0 %96
    %98 = vadd.xlane.f32.xlu0 %v72
    %v99 = vpop.xlane.xlu0 %98
    %100 = vadd.xlane.f32.xlu0 %v73
    %v101 = vpop.xlane.xlu0 %100
    %102 = vadd.xlane.f32.xlu0 %v74
    %v103 = vpop.xlane.xlu0 %102
    %104 = vadd.xlane.f32.xlu0 %v75
    %v105 = vpop.xlane.xlu0 %104
    %106 = vadd.xlane.f32.xlu0 %v76
    %v107 = vpop.xlane.xlu0 %106
    %108 = vadd.xlane.f32.xlu0 %v77
    %v109 = vpop.xlane.xlu0 %108
    %v110 = vrot.slane %v79, 4
    %v111 = vmax.f32 %v79, %v110
    %v112 = vrot.slane %v111, 2
    %v113 = vmax.f32 %v111, %v112
    %v114 = vrot.slane %v113, 1
    %v115 = vmax.f32 %v113, %v114
    %v116 = vrot.slane %v81, 4
    %v117 = vmax.f32 %v81, %v116
    %v118 = vrot.slane %v117, 2
    %v119 = vmax.f32 %v117, %v118
    %v120 = vrot.slane %v119, 1
    %v121 = vmax.f32 %v119, %v120
    %v122 = vrot.slane %v83, 4
    %v123 = vmax.f32 %v83, %v122
    %v124 = vrot.slane %v123, 2
    %v125 = vmax.f32 %v123, %v124
    %v126 = vrot.slane %v125, 1
    %v127 = vmax.f32 %v125, %v126
    %v128 = vrot.slane %v85, 4
    %v129 = vmax.f32 %v85, %v128
    %v130 = vrot.slane %v129, 2
    %v131 = vmax.f32 %v129, %v130
    %v132 = vrot.slane %v131, 1
    %v133 = vmax.f32 %v131, %v132
    %v134 = vrot.slane %v87, 4
    %v135 = vmax.f32 %v87, %v134
    %v136 = vrot.slane %v135, 2
    %v137 = vmax.f32 %v135, %v136
    %v138 = vrot.slane %v137, 1
    %v139 = vmax.f32 %v137, %v138
    %v140 = vrot.slane %v89, 4
    %v141 = vmax.f32 %v89, %v140
    %v142 = vrot.slane %v141, 2
    %v143 = vmax.f32 %v141, %v142
    %v144 = vrot.slane %v143, 1
    %v145 = vmax.f32 %v143, %v144
    %v146 = vrot.slane %v91, 4
    %v147 = vmax.f32 %v91, %v146
    %v148 = vrot.slane %v147, 2
    %v149 = vmax.f32 %v147, %v148
    %v150 = vrot.slane %v149, 1
    %v151 = vmax.f32 %v149, %v150
    %v152 = vrot.slane %v93, 4
    %v153 = vmax.f32 %v93, %v152
    %v154 = vrot.slane %v153, 2
    %v155 = vmax.f32 %v153, %v154
    %v156 = vrot.slane %v155, 1
    %v157 = vmax.f32 %v155, %v156
    %v158 = vrot.slane %v95, 4
    %v159 = vmax.f32 %v95, %v158
    %v160 = vrot.slane %v159, 2
    %v161 = vmax.f32 %v159, %v160
    %v162 = vrot.slane %v161, 1
    %v163 = vmax.f32 %v161, %v162
    %v164 = vrot.slane %v97, 4
    %v165 = vmax.f32 %v97, %v164
    %v166 = vrot.slane %v165, 2
    %v167 = vmax.f32 %v165, %v166
    %v168 = vrot.slane %v167, 1
    %v169 = vmax.f32 %v167, %v168
    %v170 = vrot.slane %v99, 4
    %v171 = vmax.f32 %v99, %v170
    %v172 = vrot.slane %v171, 2
    %v173 = vmax.f32 %v171, %v172
    %v174 = vrot.slane %v173, 1
    %v175 = vmax.f32 %v173, %v174
    %v176 = vrot.slane %v101, 4
    %v177 = vmax.f32 %v101, %v176
    %v178 = vrot.slane %v177, 2
    %v179 = vmax.f32 %v177, %v178
    %v180 = vrot.slane %v179, 1
    %v181 = vmax.f32 %v179, %v180
    %v182 = vrot.slane %v103, 4
    %v183 = vmax.f32 %v103, %v182
    %v184 = vrot.slane %v183, 2
    %v185 = vmax.f32 %v183, %v184
    %v186 = vrot.slane %v185, 1
    %v187 = vmax.f32 %v185, %v186
    %v188 = vrot.slane %v105, 4
    %v189 = vmax.f32 %v105, %v188
    %v190 = vrot.slane %v189, 2
    %v191 = vmax.f32 %v189, %v190
    %v192 = vrot.slane %v191, 1
    %v193 = vmax.f32 %v191, %v192
    %v194 = vrot.slane %v107, 4
    %v195 = vmax.f32 %v107, %v194
    %v196 = vrot.slane %v195, 2
    %v197 = vmax.f32 %v195, %v196
    %v198 = vrot.slane %v197, 1
    %v199 = vmax.f32 %v197, %v198
    %v200 = vrot.slane %v109, 4
    %v201 = vmax.f32 %v109, %v200
    %v202 = vrot.slane %v201, 2
    %v203 = vmax.f32 %v201, %v202
    %v204 = vrot.slane %v203, 1
    %v205 = vmax.f32 %v203, %v204
    %v206 = vsub.f32 %v79, %v115
    %v207 = vsub.f32 %v81, %v121
    %v208 = vsub.f32 %v83, %v127
    %v209 = vsub.f32 %v85, %v133
    %v210 = vsub.f32 %v87, %v139
    %v211 = vsub.f32 %v89, %v145
    %v212 = vsub.f32 %v91, %v151
    %v213 = vsub.f32 %v93, %v157
    %v214 = vsub.f32 %v95, %v163
    %v215 = vsub.f32 %v97, %v169
    %v216 = vsub.f32 %v99, %v175
    %v217 = vsub.f32 %v101, %v181
    %v218 = vsub.f32 %v103, %v187
    %v219 = vsub.f32 %v105, %v193
    %v220 = vsub.f32 %v107, %v199
    %v221 = vsub.f32 %v109, %v205
    %v222 = vmul.f32 %v206, 1.442695
    %v223 = vpow.pop %v222
    %v224 = vmul.f32 %v207, 1.442695
    %v225 = vpow.pop %v224
    %v226 = vmul.f32 %v208, 1.442695
    %v227 = vpow.pop %v226
    %v228 = vmul.f32 %v209, 1.442695
    %v229 = vpow.pop %v228
    %v230 = vmul.f32 %v210, 1.442695
    %v231 = vpow.pop %v230
    %v232 = vmul.f32 %v211, 1.442695
    %v233 = vpow.pop %v232
    %v234 = vmul.f32 %v212, 1.442695
    %v235 = vpow.pop %v234
    %v236 = vmul.f32 %v213, 1.442695
    %v237 = vpow.pop %v236
    %v238 = vmul.f32 %v214, 1.442695
    %v239 = vpow.pop %v238
    %v240 = vmul.f32 %v215, 1.442695
    %v241 = vpow.pop %v240
    %v242 = vmul.f32 %v216, 1.442695
    %v243 = vpow.pop %v242
    %v244 = vmul.f32 %v217, 1.442695
    %v245 = vpow.pop %v244
    %v246 = vmul.f32 %v218, 1.442695
    %v247 = vpow.pop %v246
    %v248 = vmul.f32 %v219, 1.442695
    %v249 = vpow.pop %v248
    %v250 = vmul.f32 %v220, 1.442695
    %v251 = vpow.pop %v250
    %v252 = vmul.f32 %v221, 1.442695
    %v253 = vpow.pop %v252
    %v254 = vrot.slane %v223, 4
    %v255 = vadd.f32 %v223, %v254
    %v256 = vrot.slane %v255, 2
    %v257 = vadd.f32 %v255, %v256
    %v258 = vrot.slane %v257, 1
    %v259 = vadd.f32 %v257, %v258
    %v260 = vrot.slane %v225, 4
    %v261 = vadd.f32 %v225, %v260
    %v262 = vrot.slane %v261, 2
    %v263 = vadd.f32 %v261, %v262
    %v264 = vrot.slane %v263, 1
    %v265 = vadd.f32 %v263, %v264
    %v266 = vrot.slane %v227, 4
    %v267 = vadd.f32 %v227, %v266
    %v268 = vrot.slane %v267, 2
    %v269 = vadd.f32 %v267, %v268
    %v270 = vrot.slane %v269, 1
    %v271 = vadd.f32 %v269, %v270
    %v272 = vrot.slane %v229, 4
    %v273 = vadd.f32 %v229, %v272
    %v274 = vrot.slane %v273, 2
    %v275 = vadd.f32 %v273, %v274
    %v276 = vrot.slane %v275, 1
    %v277 = vadd.f32 %v275, %v276
    %v278 = vrot.slane %v231, 4
    %v279 = vadd.f32 %v231, %v278
    %v280 = vrot.slane %v279, 2
    %v281 = vadd.f32 %v279, %v280
    %v282 = vrot.slane %v281, 1
    %v283 = vadd.f32 %v281, %v282
    %v284 = vrot.slane %v233, 4
    %v285 = vadd.f32 %v233, %v284
    %v286 = vrot.slane %v285, 2
    %v287 = vadd.f32 %v285, %v286
    %v288 = vrot.slane %v287, 1
    %v289 = vadd.f32 %v287, %v288
    %v290 = vrot.slane %v235, 4
    %v291 = vadd.f32 %v235, %v290
    %v292 = vrot.slane %v291, 2
    %v293 = vadd.f32 %v291, %v292
    %v294 = vrot.slane %v293, 1
    %v295 = vadd.f32 %v293, %v294
    %v296 = vrot.slane %v237, 4
    %v297 = vadd.f32 %v237, %v296
    %v298 = vrot.slane %v297, 2
    %v299 = vadd.f32 %v297, %v298
    %v300 = vrot.slane %v299, 1
    %v301 = vadd.f32 %v299, %v300
    %v302 = vrot.slane %v239, 4
    %v303 = vadd.f32 %v239, %v302
    %v304 = vrot.slane %v303, 2
    %v305 = vadd.f32 %v303, %v304
    %v306 = vrot.slane %v305, 1
    %v307 = vadd.f32 %v305, %v306
    %v308 = vrot.slane %v241, 4
    %v309 = vadd.f32 %v241, %v308
    %v310 = vrot.slane %v309, 2
    %v311 = vadd.f32 %v309, %v310
    %v312 = vrot.slane %v311, 1
    %v313 = vadd.f32 %v311, %v312
    %v314 = vrot.slane %v243, 4
    %v315 = vadd.f32 %v243, %v314
    %v316 = vrot.slane %v315, 2
    %v317 = vadd.f32 %v315, %v316
    %v318 = vrot.slane %v317, 1
    %v319 = vadd.f32 %v317, %v318
    %v320 = vrot.slane %v245, 4
    %v321 = vadd.f32 %v245, %v320
    %v322 = vrot.slane %v321, 2
    %v323 = vadd.f32 %v321, %v322
    %v324 = vrot.slane %v323, 1
    %v325 = vadd.f32 %v323, %v324
    %v326 = vrot.slane %v247, 4
    %v327 = vadd.f32 %v247, %v326
    %v328 = vrot.slane %v327, 2
    %v329 = vadd.f32 %v327, %v328
    %v330 = vrot.slane %v329, 1
    %v331 = vadd.f32 %v329, %v330
    %v332 = vrot.slane %v249, 4
    %v333 = vadd.f32 %v249, %v332
    %v334 = vrot.slane %v333, 2
    %v335 = vadd.f32 %v333, %v334
    %v336 = vrot.slane %v335, 1
    %v337 = vadd.f32 %v335, %v336
    %v338 = vrot.slane %v251, 4
    %v339 = vadd.f32 %v251, %v338
    %v340 = vrot.slane %v339, 2
    %v341 = vadd.f32 %v339, %v340
    %v342 = vrot.slane %v341, 1
    %v343 = vadd.f32 %v341, %v342
    %v344 = vrot.slane %v253, 4
    %v345 = vadd.f32 %v253, %v344
    %v346 = vrot.slane %v345, 2
    %v347 = vadd.f32 %v345, %v346
    %v348 = vrot.slane %v347, 1
    %v349 = vadd.f32 %v347, %v348
    %v350 = vmul.f32 %v223, %v42
    %v351 = vmul.f32 %v225, %v43
    %v352 = vmul.f32 %v227, %v44
    %v353 = vmul.f32 %v229, %v45
    %v354 = vmul.f32 %v231, %v46
    %v355 = vmul.f32 %v233, %v47
    %v356 = vmul.f32 %v235, %v48
    %v357 = vmul.f32 %v237, %v49
    %v358 = vmul.f32 %v239, %v50
    %v359 = vmul.f32 %v241, %v51
    %v360 = vmul.f32 %v243, %v52
    %v361 = vmul.f32 %v245, %v53
    %v362 = vmul.f32 %v247, %v54
    %v363 = vmul.f32 %v249, %v55
    %v364 = vmul.f32 %v251, %v56
    %v365 = vmul.f32 %v253, %v57
    %v366 = vrot.slane %v350, 4
    %v367 = vadd.f32 %v350, %v366
    %v368 = vrot.slane %v367, 2
    %v369 = vadd.f32 %v367, %v368
    %v370 = vrot.slane %v369, 1
    %v371 = vadd.f32 %v369, %v370
    %v372 = vrot.slane %v351, 4
    %v373 = vadd.f32 %v351, %v372
    %v374 = vrot.slane %v373, 2
    %v375 = vadd.f32 %v373, %v374
    %v376 = vrot.slane %v375, 1
    %v377 = vadd.f32 %v375, %v376
    %v378 = vrot.slane %v352, 4
    %v379 = vadd.f32 %v352, %v378
    %v380 = vrot.slane %v379, 2
    %v381 = vadd.f32 %v379, %v380
    %v382 = vrot.slane %v381, 1
    %v383 = vadd.f32 %v381, %v382
    %v384 = vrot.slane %v353, 4
    %v385 = vadd.f32 %v353, %v384
    %v386 = vrot.slane %v385, 2
    %v387 = vadd.f32 %v385, %v386
    %v388 = vrot.slane %v387, 1
    %v389 = vadd.f32 %v387, %v388
    %v390 = vrot.slane %v354, 4
    %v391 = vadd.f32 %v354, %v390
    %v392 = vrot.slane %v391, 2
    %v393 = vadd.f32 %v391, %v392
    %v394 = vrot.slane %v393, 1
    %v395 = vadd.f32 %v393, %v394
    %v396 = vrot.slane %v355, 4
    %v397 = vadd.f32 %v355, %v396
    %v398 = vrot.slane %v397, 2
    %v399 = vadd.f32 %v397, %v398
    %v400 = vrot.slane %v399, 1
    %v401 = vadd.f32 %v399, %v400
    %v402 = vrot.slane %v356, 4
    %v403 = vadd.f32 %v356, %v402
    %v404 = vrot.slane %v403, 2
    %v405 = vadd.f32 %v403, %v404
    %v406 = vrot.slane %v405, 1
    %v407 = vadd.f32 %v405, %v406
    %v408 = vrot.slane %v357, 4
    %v409 = vadd.f32 %v357, %v408
    %v410 = vrot.slane %v409, 2
    %v411 = vadd.f32 %v409, %v410
    %v412 = vrot.slane %v411, 1
    %v413 = vadd.f32 %v411, %v412
    %v414 = vrot.slane %v358, 4
    %v415 = vadd.f32 %v358, %v414
    %v416 = vrot.slane %v415, 2
    %v417 = vadd.f32 %v415, %v416
    %v418 = vrot.slane %v417, 1
    %v419 = vadd.f32 %v417, %v418
    %v420 = vrot.slane %v359, 4
    %v421 = vadd.f32 %v359, %v420
    %v422 = vrot.slane %v421, 2
    %v423 = vadd.f32 %v421, %v422
    %v424 = vrot.slane %v423, 1
    %v425 = vadd.f32 %v423, %v424
    %v426 = vrot.slane %v360, 4
    %v427 = vadd.f32 %v360, %v426
    %v428 = vrot.slane %v427, 2
    %v429 = vadd.f32 %v427, %v428
    %v430 = vrot.slane %v429, 1
    %v431 = vadd.f32 %v429, %v430
    %v432 = vrot.slane %v361, 4
    %v433 = vadd.f32 %v361, %v432
    %v434 = vrot.slane %v433, 2
    %v435 = vadd.f32 %v433, %v434
    %v436 = vrot.slane %v435, 1
    %v437 = vadd.f32 %v435, %v436
    %v438 = vrot.slane %v362, 4
    %v439 = vadd.f32 %v362, %v438
    %v440 = vrot.slane %v439, 2
    %v441 = vadd.f32 %v439, %v440
    %v442 = vrot.slane %v441, 1
    %v443 = vadd.f32 %v441, %v442
    %v444 = vrot.slane %v363, 4
    %v445 = vadd.f32 %v363, %v444
    %v446 = vrot.slane %v445, 2
    %v447 = vadd.f32 %v445, %v446
    %v448 = vrot.slane %v447, 1
    %v449 = vadd.f32 %v447, %v448
    %v450 = vrot.slane %v364, 4
    %v451 = vadd.f32 %v364, %v450
    %v452 = vrot.slane %v451, 2
    %v453 = vadd.f32 %v451, %v452
    %v454 = vrot.slane %v453, 1
    %v455 = vadd.f32 %v453, %v454
    %v456 = vrot.slane %v365, 4
    %v457 = vadd.f32 %v365, %v456
    %v458 = vrot.slane %v457, 2
    %v459 = vadd.f32 %v457, %v458
    %v460 = vrot.slane %v459, 1
    %v461 = vadd.f32 %v459, %v460
    %v462 = vrcp.pop %v259
    %v463 = vmul.f32 %v259, %v462
    %v464 = vsub.f32 1.0, %v463
    %v465 = vmul.f32 %v462, %v464
    %v466 = vadd.f32 %v462, %v465
    %vm467 = vweird.f32 %v259
    %vm468 = vweird.f32 %v462
    %vm469 = vmor %vm467, %vm468
    %v470 = vsel %vm469, %v462, %v466
    %v471 = vand.u32 2147483647, %v259
    %vm472 = vcmp.eq.f32.partialorder %v471, 8.507059e+37
    %v473 = vand.u32 %v259, 2147483648
    %v474 = vor.u32 1.1754944e-38, %v473
    %v475 = vsel %vm472, %v474, %v470
    %v476 = vmul.f32 %v371, %v475
    %v477 = vrcp.pop %v265
    %v478 = vmul.f32 %v265, %v477
    %v479 = vsub.f32 1.0, %v478
    %v480 = vmul.f32 %v477, %v479
    %v481 = vadd.f32 %v477, %v480
    %vm482 = vweird.f32 %v265
    %vm483 = vweird.f32 %v477
    %vm484 = vmor %vm482, %vm483
    %v485 = vsel %vm484, %v477, %v481
    %v486 = vand.u32 2147483647, %v265
    %vm487 = vcmp.eq.f32.partialorder %v486, 8.507059e+37
    %v488 = vand.u32 %v265, 2147483648
    %v489 = vor.u32 1.1754944e-38, %v488
    %v490 = vsel %vm487, %v489, %v485
    %v491 = vmul.f32 %v377, %v490
    %v492 = vrcp.pop %v271
    %v493 = vmul.f32 %v271, %v492
    %v494 = vsub.f32 1.0, %v493
    %v495 = vmul.f32 %v492, %v494
    %v496 = vadd.f32 %v492, %v495
    %vm497 = vweird.f32 %v271
    %vm498 = vweird.f32 %v492
    %vm499 = vmor %vm497, %vm498
    %v500 = vsel %vm499, %v492, %v496
    %v501 = vand.u32 2147483647, %v271
    %vm502 = vcmp.eq.f32.partialorder %v501, 8.507059e+37
    %v503 = vand.u32 %v271, 2147483648
    %v504 = vor.u32 1.1754944e-38, %v503
    %v505 = vsel %vm502, %v504, %v500
    %v506 = vmul.f32 %v383, %v505
    %v507 = vrcp.pop %v277
    %v508 = vmul.f32 %v277, %v507
    %v509 = vsub.f32 1.0, %v508
    %v510 = vmul.f32 %v507, %v509
    %v511 = vadd.f32 %v507, %v510
    %vm512 = vweird.f32 %v277
    %vm513 = vweird.f32 %v507
    %vm514 = vmor %vm512, %vm513
    %v515 = vsel %vm514, %v507, %v511
    %v516 = vand.u32 2147483647, %v277
    %vm517 = vcmp.eq.f32.partialorder %v516, 8.507059e+37
    %v518 = vand.u32 %v277, 2147483648
    %v519 = vor.u32 1.1754944e-38, %v518
    %v520 = vsel %vm517, %v519, %v515
    %v521 = vmul.f32 %v389, %v520
    %v522 = vrcp.pop %v283
    %v523 = vmul.f32 %v283, %v522
    %v524 = vsub.f32 1.0, %v523
    %v525 = vmul.f32 %v522, %v524
    %v526 = vadd.f32 %v522, %v525
    %vm527 = vweird.f32 %v283
    %vm528 = vweird.f32 %v522
    %vm529 = vmor %vm527, %vm528
    %v530 = vsel %vm529, %v522, %v526
    %v531 = vand.u32 2147483647, %v283
    %vm532 = vcmp.eq.f32.partialorder %v531, 8.507059e+37
    %v533 = vand.u32 %v283, 2147483648
    %v534 = vor.u32 1.1754944e-38, %v533
    %v535 = vsel %vm532, %v534, %v530
    %v536 = vmul.f32 %v395, %v535
    %v537 = vrcp.pop %v289
    %v538 = vmul.f32 %v289, %v537
    %v539 = vsub.f32 1.0, %v538
    %v540 = vmul.f32 %v537, %v539
    %v541 = vadd.f32 %v537, %v540
    %vm542 = vweird.f32 %v289
    %vm543 = vweird.f32 %v537
    %vm544 = vmor %vm542, %vm543
    %v545 = vsel %vm544, %v537, %v541
    %v546 = vand.u32 2147483647, %v289
    %vm547 = vcmp.eq.f32.partialorder %v546, 8.507059e+37
    %v548 = vand.u32 %v289, 2147483648
    %v549 = vor.u32 1.1754944e-38, %v548
    %v550 = vsel %vm547, %v549, %v545
    %v551 = vmul.f32 %v401, %v550
    %v552 = vrcp.pop %v295
    %v553 = vmul.f32 %v295, %v552
    %v554 = vsub.f32 1.0, %v553
    %v555 = vmul.f32 %v552, %v554
    %v556 = vadd.f32 %v552, %v555
    %vm557 = vweird.f32 %v295
    %vm558 = vweird.f32 %v552
    %vm559 = vmor %vm557, %vm558
    %v560 = vsel %vm559, %v552, %v556
    %v561 = vand.u32 2147483647, %v295
    %vm562 = vcmp.eq.f32.partialorder %v561, 8.507059e+37
    %v563 = vand.u32 %v295, 2147483648
    %v564 = vor.u32 1.1754944e-38, %v563
    %v565 = vsel %vm562, %v564, %v560
    %v566 = vmul.f32 %v407, %v565
    %v567 = vrcp.pop %v301
    %v568 = vmul.f32 %v301, %v567
    %v569 = vsub.f32 1.0, %v568
    %v570 = vmul.f32 %v567, %v569
    %v571 = vadd.f32 %v567, %v570
    %vm572 = vweird.f32 %v301
    %vm573 = vweird.f32 %v567
    %vm574 = vmor %vm572, %vm573
    %v575 = vsel %vm574, %v567, %v571
    %v576 = vand.u32 2147483647, %v301
    %vm577 = vcmp.eq.f32.partialorder %v576, 8.507059e+37
    %v578 = vand.u32 %v301, 2147483648
    %v579 = vor.u32 1.1754944e-38, %v578
    %v580 = vsel %vm577, %v579, %v575
    %v581 = vmul.f32 %v413, %v580
    %v582 = vrcp.pop %v307
    %v583 = vmul.f32 %v307, %v582
    %v584 = vsub.f32 1.0, %v583
    %v585 = vmul.f32 %v582, %v584
    %v586 = vadd.f32 %v582, %v585
    %vm587 = vweird.f32 %v307
    %vm588 = vweird.f32 %v582
    %vm589 = vmor %vm587, %vm588
    %v590 = vsel %vm589, %v582, %v586
    %v591 = vand.u32 2147483647, %v307
    %vm592 = vcmp.eq.f32.partialorder %v591, 8.507059e+37
    %v593 = vand.u32 %v307, 2147483648
    %v594 = vor.u32 1.1754944e-38, %v593
    %v595 = vsel %vm592, %v594, %v590
    %v596 = vmul.f32 %v419, %v595
    %v597 = vrcp.pop %v313
    %v598 = vmul.f32 %v313, %v597
    %v599 = vsub.f32 1.0, %v598
    %v600 = vmul.f32 %v597, %v599
    %v601 = vadd.f32 %v597, %v600
    %vm602 = vweird.f32 %v313
    %vm603 = vweird.f32 %v597
    %vm604 = vmor %vm602, %vm603
    %v605 = vsel %vm604, %v597, %v601
    %v606 = vand.u32 2147483647, %v313
    %vm607 = vcmp.eq.f32.partialorder %v606, 8.507059e+37
    %v608 = vand.u32 %v313, 2147483648
    %v609 = vor.u32 1.1754944e-38, %v608
    %v610 = vsel %vm607, %v609, %v605
    %v611 = vmul.f32 %v425, %v610
    %v612 = vrcp.pop %v319
    %v613 = vmul.f32 %v319, %v612
    %v614 = vsub.f32 1.0, %v613
    %v615 = vmul.f32 %v612, %v614
    %v616 = vadd.f32 %v612, %v615
    %vm617 = vweird.f32 %v319
    %vm618 = vweird.f32 %v612
    %vm619 = vmor %vm617, %vm618
    %v620 = vsel %vm619, %v612, %v616
    %v621 = vand.u32 2147483647, %v319
    %vm622 = vcmp.eq.f32.partialorder %v621, 8.507059e+37
    %v623 = vand.u32 %v319, 2147483648
    %v624 = vor.u32 1.1754944e-38, %v623
    %v625 = vsel %vm622, %v624, %v620
    %v626 = vmul.f32 %v431, %v625
    %v627 = vrcp.pop %v325
    %v628 = vmul.f32 %v325, %v627
    %v629 = vsub.f32 1.0, %v628
    %v630 = vmul.f32 %v627, %v629
    %v631 = vadd.f32 %v627, %v630
    %vm632 = vweird.f32 %v325
    %vm633 = vweird.f32 %v627
    %vm634 = vmor %vm632, %vm633
    %v635 = vsel %vm634, %v627, %v631
    %v636 = vand.u32 2147483647, %v325
    %vm637 = vcmp.eq.f32.partialorder %v636, 8.507059e+37
    %v638 = vand.u32 %v325, 2147483648
    %v639 = vor.u32 1.1754944e-38, %v638
    %v640 = vsel %vm637, %v639, %v635
    %v641 = vmul.f32 %v437, %v640
    %v642 = vrcp.pop %v331
    %v643 = vmul.f32 %v331, %v642
    %v644 = vsub.f32 1.0, %v643
    %v645 = vmul.f32 %v642, %v644
    %v646 = vadd.f32 %v642, %v645
    %vm647 = vweird.f32 %v331
    %vm648 = vweird.f32 %v642
    %vm649 = vmor %vm647, %vm648
    %v650 = vsel %vm649, %v642, %v646
    %v651 = vand.u32 2147483647, %v331
    %vm652 = vcmp.eq.f32.partialorder %v651, 8.507059e+37
    %v653 = vand.u32 %v331, 2147483648
    %v654 = vor.u32 1.1754944e-38, %v653
    %v655 = vsel %vm652, %v654, %v650
    %v656 = vmul.f32 %v443, %v655
    %v657 = vrcp.pop %v337
    %v658 = vmul.f32 %v337, %v657
    %v659 = vsub.f32 1.0, %v658
    %v660 = vmul.f32 %v657, %v659
    %v661 = vadd.f32 %v657, %v660
    %vm662 = vweird.f32 %v337
    %vm663 = vweird.f32 %v657
    %vm664 = vmor %vm662, %vm663
    %v665 = vsel %vm664, %v657, %v661
    %v666 = vand.u32 2147483647, %v337
    %vm667 = vcmp.eq.f32.partialorder %v666, 8.507059e+37
    %v668 = vand.u32 %v337, 2147483648
    %v669 = vor.u32 1.1754944e-38, %v668
    %v670 = vsel %vm667, %v669, %v665
    %v671 = vmul.f32 %v449, %v670
    %v672 = vrcp.pop %v343
    %v673 = vmul.f32 %v343, %v672
    %v674 = vsub.f32 1.0, %v673
    %v675 = vmul.f32 %v672, %v674
    %v676 = vadd.f32 %v672, %v675
    %vm677 = vweird.f32 %v343
    %vm678 = vweird.f32 %v672
    %vm679 = vmor %vm677, %vm678
    %v680 = vsel %vm679, %v672, %v676
    %v681 = vand.u32 2147483647, %v343
    %vm682 = vcmp.eq.f32.partialorder %v681, 8.507059e+37
    %v683 = vand.u32 %v343, 2147483648
    %v684 = vor.u32 1.1754944e-38, %v683
    %v685 = vsel %vm682, %v684, %v680
    %v686 = vmul.f32 %v455, %v685
    %v687 = vrcp.pop %v349
    %v688 = vmul.f32 %v349, %v687
    %v689 = vsub.f32 1.0, %v688
    %v690 = vmul.f32 %v687, %v689
    %v691 = vadd.f32 %v687, %v690
    %vm692 = vweird.f32 %v349
    %vm693 = vweird.f32 %v687
    %vm694 = vmor %vm692, %vm693
    %v695 = vsel %vm694, %v687, %v691
    %v696 = vand.u32 2147483647, %v349
    %vm697 = vcmp.eq.f32.partialorder %v696, 8.507059e+37
    %v698 = vand.u32 %v349, 2147483648
    %v699 = vor.u32 1.1754944e-38, %v698
    %v700 = vsel %vm697, %v699, %v695
    %v701 = vmul.f32 %v461, %v700
    %vm718 = vcmask 1041409
    %v719 = vsel %vm718, %v491, %v476
    %vm720 = vcmask 1042434
    %v721 = vsel %vm720, %v506, %v719
    %vm722 = vcmask 1043459
    %v723 = vsel %vm722, %v521, %v721
    %vm724 = vcmask 1044484
    %v725 = vsel %vm724, %v536, %v723
    %vm726 = vcmask 1045509
    %v727 = vsel %vm726, %v551, %v725
    %vm728 = vcmask 1046534
    %v729 = vsel %vm728, %v566, %v727
    %vm730 = vcmask 1047559
    %v731 = vsel %vm730, %v581, %v729
    %v732 = vsel %vm718, %v611, %v596
    %v733 = vsel %vm720, %v626, %v732
    %v734 = vsel %vm722, %v641, %v733
    %v735 = vsel %vm724, %v656, %v734
    %v736 = vsel %vm726, %v671, %v735
    %v737 = vsel %vm728, %v686, %v736
    %v738 = vsel %vm730, %v701, %v737
    %741 = vst [vmem:[#allocation7] sm:$0xff] %v731
    %742 = vst [vmem:[#allocation7 + $0x8] sm:$0xff] %v738
    // Predicated region
    $region18: #{tpu_custom_call.1} parent=1 // pred_check
      _
    $region19: #{tpu_custom_call.1} parent=1 // pred_check_branch
      %744 = sbr.rel (0) target = $region21
    $region20: #{tpu_custom_call.1} parent=1 // pred_region
      %746 = vsyncadd [#allocation4], 0
      %s747 = sshll.u32 [#allocation7], 4
      %s748 = int_to_ptr.vmem [resolvable:$true] %s747
      %s749 = sshll.u32 %s2, 4
      %s750 = int_to_ptr.hbm [resolvable:$true] %s749
      %755 = dma.vmem_to_hbm [thread:$0]  %s748, 256, %s750, [#allocation4], 128, 128, 8
    $region21: #{tpu_custom_call.1} parent=1 // pred_fallthru
      _
    // Predicated region
    $region22: #{tpu_custom_call.1} parent=1 // pred_check
      _
    $region23: #{tpu_custom_call.1} parent=1 // pred_check_branch
      %757 = sbr.rel (0) target = $region25
    $region24: #{tpu_custom_call.1} parent=1 // pred_region
      %759 = dma.done [#allocation4], 256
    $region25: #{tpu_custom_call.1} parent=1 // pred_fallthru
      _
    %760 = vsyncpa [#allocation3], 1
    %761 = vsyncpa [#allocation6], 1
    %762 = vsyncpa [#allocation4], 1

</llo_original>
